<compile_context>
chip_gen: v7x
topology: tpu7x:2x2x1
jax: 0.10.0
libtpu: 0.0.40
codegen_flags: <defaults>
</compile_context>

<pallas_src>
import functools
import math

import numpy as np
import jax
import jax.numpy as jnp
from jax.experimental import pallas as pl
from jax.experimental.pallas import tpu as pltpu


# ----------------------------------------------------------------------------
# Sparse geometry (pure python, identical math to the PyTorch reference)
# ----------------------------------------------------------------------------
def _bisect(f, a, b, xtol=1e-6):
    fa = f(a)
    while (b - a) > xtol:
        m = 0.5 * (a + b)
        fm = f(m)
        if fa * fm <= 0:
            b = m
        else:
            a, fa = m, fm
    return 0.5 * (a + b)


def reduction_factor(density, blocks):
    def delta(a):
        res = 1.0
        for b in range(1, blocks):
            res += a ** b
        return res / blocks - density
    return _bisect(delta, 0.0, 1.0, xtol=1e-6)


def calc_sparse_geometry(vocab, dim, density, blocks):
    vocab_remaining = vocab
    dim_remaining = dim
    blocks_remaining = blocks
    density_remaining = density
    block_widths = []
    start_ids = []
    all_params = 0
    w = int(np.floor(dim / blocks))
    block_widths.append(w)
    start_ids.append(0)
    all_params += w * vocab
    if blocks > 2:
        for _k in range(1, blocks - 1):
            block_widths.append(w)
            if density_remaining > 0:
                alpha_k = reduction_factor(density_remaining, blocks_remaining)
                vocab_reduction = int(np.ceil(vocab_remaining * (1 - alpha_k)))
                vocab_remaining -= vocab_reduction
                dim_remaining -= w
                blocks_remaining -= 1
                start_ids.append(start_ids[-1] + vocab_reduction)
                if vocab_remaining * dim_remaining > 0 and vocab * dim * density - all_params > 0:
                    density_remaining = (vocab * dim * density - all_params) / (vocab_remaining * dim_remaining)
                    density_remaining = min(1.0, density_remaining)
                    all_params += vocab_remaining * w
                else:
                    density_remaining = 0
            else:
                start_ids.append(vocab)
    if blocks > 1:
        w_last = int(dim - np.sum(block_widths))
        block_widths.append(w_last)
        remaining_params = max(0, np.floor(vocab * dim * density) - all_params)
        remaining_vocab_last = int(np.round(remaining_params / w_last))
        start_ids.append(vocab - remaining_vocab_last)
        all_params += w_last * remaining_vocab_last
    resulting_density = all_params / (vocab * dim)
    return list(start_ids), list(block_widths), float(resulting_density)


# ----------------------------------------------------------------------------
# Pallas kernel: tiled one-hot matmul against the fused (V, dim_pad) table.
#   grid = (num_token_tiles, num_vocab_tiles); vocab is the reduction axis.
# ----------------------------------------------------------------------------
def _onehot_matmul_kernel(ids_ref, tab_ref, out_ref, acc_ref, *, vocab_tile):
    j = pl.program_id(1)

    @pl.when(j == 0)
    def _():
        acc_ref[...] = jnp.zeros_like(acc_ref)

    ids = ids_ref[...]                                    # (TN, 1) int32
    tn = ids.shape[0]
    # per-tile one-hot: global column id of this vocab tile vs. token ids
    col = j * vocab_tile + jax.lax.broadcasted_iota(jnp.int32, (tn, vocab_tile), 1)
    onehot = (ids == col).astype(tab_ref.dtype)           # (TN, TV), exact 0/1
    # one wide MXU matmul per tile: (TN, TV) @ (TV, dim_pad)
    acc_ref[...] += jnp.dot(onehot, tab_ref[...], preferred_element_type=jnp.float32)

    @pl.when(j == pl.num_programs(1) - 1)
    def _():
        out_ref[...] = acc_ref[...].astype(out_ref.dtype)


def _round_up(x, m):
    return ((x + m - 1) // m) * m


def sparse_embedding_forward(indices, total_tables, *, token_tile=256, vocab_tile=512):
    """Eval-mode forward of SparseEmbedding.

    indices:      (seq, batch) int32 indices over the full vocab range.
    total_tables: list of (V, w_i) float tables, block i already zero-prepadded
                  up to start_ids[i] (as in RawEmbedding.get_total_weight()).
    Returns (seq, batch, sum(w_i)) float32 == torch.cat([emb_i], dim=2).
    """
    seq, batch = indices.shape
    n_tokens = seq * batch
    vocab = int(total_tables[0].shape[0])
    widths = [int(t.shape[1]) for t in total_tables]
    dim = sum(widths)
    tab_dtype = total_tables[0].dtype
    itemsize = jnp.dtype(tab_dtype).itemsize

    # ---- padded / tiled geometry (lane-dense output, MXU-friendly tiles) ----
    dim_pad = _round_up(dim, 128)                    # lane-dense output slab
    tn = min(token_tile, _round_up(n_tokens, 8))     # token tile (sublane-aligned)
    n_pad = _round_up(n_tokens, tn)
    tv = min(vocab_tile, _round_up(vocab, 8))        # vocab (reduction) tile
    v_pad = _round_up(vocab, tv)

    # Fuse the per-block tables column-wise into a single (V_pad, dim_pad) slab.
    # The per-block zero prefixes are already baked in, so one wide matmul
    # reproduces the per-block gather + concat exactly.
    table = jnp.zeros((v_pad, dim_pad), dtype=tab_dtype)
    off = 0
    for t, w in zip(total_tables, widths):
        table = table.at[:vocab, off:off + w].set(t.astype(tab_dtype))
        off += w

    # Token ids, padded with -1 (matches no one-hot column -> zero rows, sliced off).
    ids = indices.reshape(-1).astype(jnp.int32)
    ids = jnp.pad(ids, (0, n_pad - n_tokens), constant_values=-1)
    ids2d = ids.reshape(n_pad, 1)

    grid = (n_pad // tn, v_pad // tv)

    # VMEM budget: double-buffered ids/table/out tiles + resident f32 accumulator.
    vmem_bytes = (2 * (tn * 4 + tv * dim_pad * itemsize + tn * dim_pad * 4)
                  + tn * dim_pad * 4)
    vmem_limit = int(min(max(vmem_bytes * 2 + (4 << 20), 16 << 20), 48 << 20))

    cost = pl.CostEstimate(
        flops=2 * n_pad * v_pad * dim_pad,
        transcendentals=0,
        bytes_accessed=(n_pad * 4
                        + grid[0] * v_pad * dim_pad * itemsize   # table streamed per token tile
                        + n_pad * dim_pad * 4),
    )

    kernel = functools.partial(_onehot_matmul_kernel, vocab_tile=tv)

    out = pl.pallas_call(
        kernel,
        out_shape=jax.ShapeDtypeStruct((n_pad, dim_pad), jnp.float32),
        grid_spec=pltpu.PrefetchScalarGridSpec(
            num_scalar_prefetch=0,
            grid=grid,
            in_specs=[
                pl.BlockSpec((tn, 1), lambda i, j: (i, 0)),         # token-id tile
                pl.BlockSpec((tv, dim_pad), lambda i, j: (j, 0)),   # fused table tile
            ],
            out_specs=pl.BlockSpec((tn, dim_pad), lambda i, j: (i, 0)),
            scratch_shapes=[pltpu.VMEM((tn, dim_pad), jnp.float32)],
        ),
        compiler_params=pltpu.CompilerParams(
            dimension_semantics=("parallel", "arbitrary"),  # tokens megacore-parallel, vocab reduction last
            vmem_limit_bytes=vmem_limit,
        ),
        cost_estimate=cost,
    )(ids2d, table)

    return out[:n_tokens, :dim].reshape(seq, batch, dim)


# ----------------------------------------------------------------------------
# Module construction (deterministic parameter init, as in init_weights(0.1))
# ----------------------------------------------------------------------------
def build_sparse_embedding_params(key, num_embeddings, embedding_dim, blocks, density):
    start_ids, block_widths, emp_density = calc_sparse_geometry(
        num_embeddings, embedding_dim, density, blocks
    )
    total_tables = []
    for s, w in zip(start_ids, block_widths):
        key, sub = jax.random.split(key)
        weight = jax.random.uniform(
            sub, (num_embeddings - s, w), dtype=jnp.float32, minval=-0.1, maxval=0.1
        )
        prepad = jnp.zeros((s, w), dtype=jnp.float32)
        total_tables.append(jnp.concatenate([prepad, weight], axis=0))  # (V, w_i)
    return total_tables, start_ids, block_widths, emp_density


if __name__ == "__main__":
    key = jax.random.PRNGKey(0)

    def run_case(case_key, num_embeddings, embedding_dim, blocks, density, seq, batch, **tiles):
        k_ids, k_params = jax.random.split(case_key)
        tables, start_ids, block_widths, emp_density = build_sparse_embedding_params(
            k_params, num_embeddings, embedding_dim, blocks, density
        )
        indices = jax.random.randint(
            k_ids, (seq, batch), 0, num_embeddings, dtype=jnp.int32
        )
        out = sparse_embedding_forward(indices, tables, **tiles)
        out = jax.block_until_ready(out)
        # pure-JAX reference (gather per block, concat along dim=2)
        ref = jnp.concatenate([jnp.take(t, indices, axis=0) for t in tables], axis=2)
        assert out.shape == (seq, batch, embedding_dim), out.shape
        np.testing.assert_allclose(np.asarray(out), np.asarray(ref), rtol=1e-5, atol=1e-5)

    key, k1, k2 = jax.random.split(key, 3)

    # Small case matching the module defaults (single grid step).
    run_case(k1, num_embeddings=32, embedding_dim=16, blocks=2, density=0.75,
             seq=8, batch=2)

    # Multi-tile case exercising the (token x vocab-reduction) grid + accumulator.
    run_case(k2, num_embeddings=300, embedding_dim=160, blocks=3, density=0.5,
             seq=24, batch=4, token_tile=32, vocab_tile=128)

    print("KERNEL_OK")
</pallas_src>

<mosaic_0001>
module attributes {stable_mosaic.version = 11 : i64} {
  func.func @_onehot_matmul_kernel(%arg0: i32, %arg1: i32, %arg2: memref<16x1xi32, #tpu.memory_space<vmem>>, %arg3: memref<32x128xf32, #tpu.memory_space<vmem>>, %arg4: memref<16x128xf32, #tpu.memory_space<vmem>>, %arg5: memref<16x128xf32, #tpu.memory_space<vmem>>) attributes {dimension_semantics = [#tpu.dimension_semantics<parallel>, #tpu.dimension_semantics<arbitrary>], iteration_bounds = array<i64: 1, 1>, scalar_prefetch = 0 : i64, scratch_operands = 1 : i64, tpu.core_type = #tpu.core_type<tc>, window_params = [{transform_indices = @transform_0, window_bounds = array<i64: 16, 1>}, {transform_indices = @transform_1, window_bounds = array<i64: 32, 128>}, {transform_indices = @transform_2, window_bounds = array<i64: 16, 128>}]} {
    %c0_i32 = arith.constant 0 : i32
    %0 = arith.cmpi eq, %arg1, %c0_i32 : i32
    %1 = arith.extui %0 : i1 to i32
    %c0_i32_0 = arith.constant 0 : i32
    %2 = arith.cmpi ne, %1, %c0_i32_0 : i32
    scf.if %2 {
      %cst_10 = arith.constant 0.000000e+00 : f32
      %20 = vector.broadcast %cst_10 : f32 to vector<16x128xf32>
      %c0_11 = arith.constant 0 : index
      %c0_12 = arith.constant 0 : index
      %21 = vector.load %arg5[%c0_11, %c0_12] : memref<16x128xf32, #tpu.memory_space<vmem>>, vector<16x128xf32>
      tpu.vector_store %arg5[%c0_11, %c0_12], %20 {strides = array<i32>} : memref<16x128xf32, #tpu.memory_space<vmem>>, vector<16x128xf32>,
    } else {
    }
    %c0 = arith.constant 0 : index
    %c0_1 = arith.constant 0 : index
    %3 = vector.load %arg2[%c0, %c0_1] : memref<16x1xi32, #tpu.memory_space<vmem>>, vector<16x1xi32>
    %c32_i32 = arith.constant 32 : i32
    %4 = arith.muli %arg1, %c32_i32 : i32
    %5 = tpu.iota {dimensions = array<i32: 1>} : vector<16x32xi32>
    %6 = vector.broadcast %4 : i32 to vector<16x32xi32>
    %7 = arith.addi %6, %5 : vector<16x32xi32>
    %8 = vector.broadcast %3 : vector<16x1xi32> to vector<16x32xi32>
    %9 = arith.cmpi eq, %8, %7 : vector<16x32xi32>
    %10 = arith.extui %9 : vector<16x32xi1> to vector<16x32xi32>
    %11 = arith.sitofp %10 : vector<16x32xi32> to vector<16x32xf32>
    %c0_2 = arith.constant 0 : index
    %c0_3 = arith.constant 0 : index
    %12 = vector.load %arg5[%c0_2, %c0_3] : memref<16x128xf32, #tpu.memory_space<vmem>>, vector<16x128xf32>
    %c0_4 = arith.constant 0 : index
    %c0_5 = arith.constant 0 : index
    %13 = vector.load %arg3[%c0_4, %c0_5] : memref<32x128xf32, #tpu.memory_space<vmem>>, vector<32x128xf32>
    %cst = arith.constant dense<0.000000e+00> : vector<16x128xf32>
    %14 = tpu.matmul %11, %13, %cst {dimension_numbers = #tpu.dot_dimension_numbers<[1], [0], [0], [1], [0, 0, 1, 1], [], []>} : vector<16x32xf32>, vector<32x128xf32>, vector<16x128xf32> -> vector<16x128xf32>
    %15 = arith.addf %12, %14 : vector<16x128xf32>
    %c0_6 = arith.constant 0 : index
    %c0_7 = arith.constant 0 : index
    %16 = vector.load %arg5[%c0_6, %c0_7] : memref<16x128xf32, #tpu.memory_space<vmem>>, vector<16x128xf32>
    tpu.vector_store %arg5[%c0_6, %c0_7], %15 {strides = array<i32>} : memref<16x128xf32, #tpu.memory_space<vmem>>, vector<16x128xf32>,
    %c0_i32_8 = arith.constant 0 : i32
    %17 = arith.cmpi eq, %arg1, %c0_i32_8 : i32
    %18 = arith.extui %17 : i1 to i32
    %c0_i32_9 = arith.constant 0 : i32
    %19 = arith.cmpi ne, %18, %c0_i32_9 : i32
    scf.if %19 {
      %c0_10 = arith.constant 0 : index
      %c0_11 = arith.constant 0 : index
      %20 = vector.load %arg5[%c0_10, %c0_11] : memref<16x128xf32, #tpu.memory_space<vmem>>, vector<16x128xf32>
      %c0_12 = arith.constant 0 : index
      %c0_13 = arith.constant 0 : index
      %21 = vector.load %arg4[%c0_12, %c0_13] : memref<16x128xf32, #tpu.memory_space<vmem>>, vector<16x128xf32>
      tpu.vector_store %arg4[%c0_12, %c0_13], %20 {strides = array<i32>} : memref<16x128xf32, #tpu.memory_space<vmem>>, vector<16x128xf32>,
    } else {
    }
    return
  }
  func.func @transform_0(%arg0: i32, %arg1: i32) -> (i32, i32) {
    %c0_i32 = arith.constant 0 : i32
    %c0_i32_0 = arith.constant 0 : i32
    return %arg0, %c0_i32 : i32, i32
  }
  func.func @transform_1(%arg0: i32, %arg1: i32) -> (i32, i32) {
    %c0_i32 = arith.constant 0 : i32
    %c0_i32_0 = arith.constant 0 : i32
    return %arg1, %c0_i32 : i32, i32
  }
  func.func @transform_2(%arg0: i32, %arg1: i32) -> (i32, i32) {
    %c0_i32 = arith.constant 0 : i32
    %c0_i32_0 = arith.constant 0 : i32
    return %arg0, %c0_i32 : i32, i32
  }
}

</mosaic_0001>

<llo_original>
// kernel: tpu_custom_call.1
$region0: #{tpu_custom_call.1}
  #allocation0 [shape = 'u32[]', space=smem, size = 0x4, offset = 0x4, fixed_abs, tag = 'smem constant byte address 0x4 - core index']
  #allocation1 [shape = 'u32[144,128]{1,0:T(1,128)}', space=vmem, size = 0x12000, scoped, tag = 'internal scratch']
  #allocation2 [shape = 'f32[16,128]{1,0:T(8,128)}', space=vmem, size = 0x2000, scoped, tag = 'scratch operand']
  %s0 = inlined_call_operand.vmem [shape: s32[16,1], index: 0, kind: input, shape index: {}]
  %s1 = inlined_call_operand.hbm [shape: f32[32,128], index: 1, kind: input, shape index: {}]
  %s2 = inlined_call_operand.hbm [shape: f32[16,128], index: 2, kind: output, shape index: {}]
  %s3 = sld [smem:[#allocation0]]
  $region30: #{tpu_custom_call.1} parent=0
    _
  %s5 = ssub.s32 1, %s3
  %s6 = scalar_select 0, %s5, %s3
  $region1: #{tpu_custom_call.1} parent=0
    #allocation3 [shape = 'u8[16384]{0}', space=vmem, size = 0x4000, scoped, tag = 'input window, operand 1, single buffered']
    #allocation4 [shape = 's32[1]{0}', space=sflag, size = 0x4, scoped, tag = 'scoped memory for tpu_custom_call.1']
    #allocation5 [shape = 's32[1]{0}', space=sflag, size = 0x4, scoped, tag = 'scoped memory for tpu_custom_call.1']
    #allocation6 [shape = 'u8[8192]{0}', space=vmem, size = 0x2000, scoped, tag = 'output window, operand 0, single buffered']
    %7 = vsyncpa [#allocation4], 0
    %8 = vsyncpa [#allocation5], 0
    // Predicated region
    $region2: #{tpu_custom_call.1} parent=1 // pred_check
      _
    $region3: #{tpu_custom_call.1} parent=1 // pred_check_branch
      %10 = sbr.rel (0) target = $region5
    $region4: #{tpu_custom_call.1} parent=1 // pred_region
      _
    $region5: #{tpu_custom_call.1} parent=1 // pred_fallthru
      _
    // Predicated region
    $region6: #{tpu_custom_call.1} parent=1 // pred_check
      _
    $region7: #{tpu_custom_call.1} parent=1 // pred_check_branch
      %12 = sbr.rel (0) target = $region9
    $region8: #{tpu_custom_call.1} parent=1 // pred_region
      %s14 = ssub.s32 512, 512
      %15 = vsyncadd [#allocation4], %s14
      %s16 = sshll.u32 [#allocation3], 4
      %s17 = int_to_ptr.vmem [resolvable:$true] %s16
      %22 = dma.hbm_to_vmem [thread:$0]  %s1, 512, %s17, [#allocation4], 128, 128, 8
    $region9: #{tpu_custom_call.1} parent=1 // pred_fallthru
      _
    // Predicated region
    $region10: #{tpu_custom_call.1} parent=1 // pred_check
      _
    $region11: #{tpu_custom_call.1} parent=1 // pred_check_branch
      %24 = sbr.rel (0) target = $region13
    $region12: #{tpu_custom_call.1} parent=1 // pred_region
      %25 = dma.done [#allocation4], 512
    $region13: #{tpu_custom_call.1} parent=1 // pred_fallthru
      _
    %p26 = scmp.eq.s32.totalorder 0, 0
    // Predicated region
    $region14: #{tpu_custom_call.1} parent=1 // pred_check
      %p27 = pneg %p26
    $region15: #{tpu_custom_call.1} parent=1 // pred_check_branch
      %29 = sbr.rel (%p27) target = $region17
    $region16: #{tpu_custom_call.1} parent=1 // pred_region
      %30 = vst [vmem:[#allocation2] sm:$0xff] 0.0
      %31 = vst [vmem:[#allocation2 + $0x8] sm:$0xff] 0.0
    $region17: #{tpu_custom_call.1} parent=1 // pred_fallthru
      _
    %v32 = vld [vmem:[%s0] sm:$0xff]
    %v33 = vld [vmem:[%s0 + $0x8] sm:$0xff]
    %s34 = smul.u32 0, 32
    %v35 = vlaneseq
    %v36 = vand.u32 %v35, 127
    %v37 = vstv %s34
    %v38 = vadd.s32 %v37, %v36
    %39 = vset.pattern.permute.xlu0 0
    %40 = vperm.xlu0 %39, %v32
    %v41 = vpop.permute.xlu0 %40
    %42 = vset.pattern.permute.xlu0 0
    %43 = vperm.xlu0 %42, %v33
    %v44 = vpop.permute.xlu0 %43
    %vm45 = vcmp.eq.s32.totalorder %v41, %v38
    %vm46 = vcmp.eq.s32.totalorder %v44, %v38
    %v47 = vsel %vm45, 1, 0
    %v48 = vsel %vm46, 1, 0
    %v49 = vcvt.s32.f32 %v47
    %v50 = vcvt.s32.f32 %v48
    %v51 = vld [vmem:[#allocation2] sm:$0xff]
    %v52 = vld [vmem:[#allocation2 + $0x8] sm:$0xff]
    %v53 = vld [vmem:[#allocation3] sm:$0xff]
    %v54 = vld [vmem:[#allocation3 + $0x8] sm:$0xff]
    %v55 = vld [vmem:[#allocation3 + $0x10] sm:$0xff]
    %v56 = vld [vmem:[#allocation3 + $0x18] sm:$0xff]
    %vm57 = vcmask 261120
    %v59 = vsel %vm57, %v49, 0
    %v62 = vsel %vm57, %v50, 0
    %64 = vmatprep.subr.mxu0 0.0
    %65 = vmatpush1.msra.mxu0 %v53
    %66 = vmatprep.subr.mxu0 0.0
    %67 = vmatpush1.msra.mxu0 %v54
    %68 = vmatprep.subr.mxu0 0.0
    %69 = vmatpush1.msra.mxu0 %v55
    %70 = vmatprep.subr.mxu0 0.0
    %71 = vmatpush1.msra.mxu0 %v56
    %72 = vmatprep.subr.mxu0 0.0
    %73 = vmatpush1.msra.mxu0 0.0
    %74 = vmatprep.subr.mxu0 0.0
    %75 = vmatpush1.msra.mxu0 0.0
    %76 = vmatprep.subr.mxu0 0.0
    %77 = vmatpush1.msra.mxu0 0.0
    %78 = vmatprep.subr.mxu0 0.0
    %79 = vmatpush1.msra.mxu0 0.0
    %80 = vmatprep.subr.mxu0 0.0
    %81 = vmatpush1.msra.mxu0 0.0
    %82 = vmatprep.subr.mxu0 0.0
    %83 = vmatpush1.msra.mxu0 0.0
    %84 = vmatprep.subr.mxu0 0.0
    %85 = vmatpush1.msra.mxu0 0.0
    %86 = vmatprep.subr.mxu0 0.0
    %87 = vmatpush1.msra.mxu0 0.0
    %88 = vmatprep.subr.mxu0 0.0
    %89 = vmatpush1.msra.mxu0 0.0
    %90 = vmatprep.subr.mxu0 0.0
    %91 = vmatpush1.msra.mxu0 0.0
    %92 = vmatprep.subr.mxu0 0.0
    %93 = vmatpush1.msra.mxu0 0.0
    %94 = vmatprep.subr.mxu0 0.0
    %95 = vmatpush1.msra.mxu0 0.0
    %96 = vmatprep.subr.mxu0 0.0
    %97 = vmatpush1.msra.mxu0 0.0
    %98 = vmatprep.subr.mxu0 0.0
    %99 = vmatpush1.msra.mxu0 0.0
    %100 = vmatprep.subr.mxu0 0.0
    %101 = vmatpush1.msra.mxu0 0.0
    %102 = vmatprep.subr.mxu0 0.0
    %103 = vmatpush1.msra.mxu0 0.0
    %104 = vmatprep.subr.mxu0 0.0
    %105 = vmatpush1.msra.mxu0 0.0
    %106 = vmatprep.subr.mxu0 0.0
    %107 = vmatpush1.msra.mxu0 0.0
    %108 = vmatprep.subr.mxu0 0.0
    %109 = vmatpush1.msra.mxu0 0.0
    %110 = vmatprep.subr.mxu0 0.0
    %111 = vmatpush1.msra.mxu0 0.0
    %112 = vmatprep.subr.mxu0 0.0
    %113 = vmatpush1.msra.mxu0 0.0
    %114 = vmatprep.subr.mxu0 0.0
    %115 = vmatpush1.msra.mxu0 0.0
    %116 = vmatprep.subr.mxu0 0.0
    %117 = vmatpush1.msra.mxu0 0.0
    %118 = vmatprep.subr.mxu0 0.0
    %119 = vmatpush1.msra.mxu0 0.0
    %120 = vmatprep.subr.mxu0 0.0
    %121 = vmatpush1.msra.mxu0 0.0
    %122 = vmatprep.subr.mxu0 0.0
    %123 = vmatpush1.msra.mxu0 0.0
    %124 = vmatprep.subr.mxu0 0.0
    %125 = vmatpush1.msra.mxu0 0.0
    %126 = vmatprep.subr.mxu0 0.0
    %127 = vmatpush1.msra.mxu0 0.0
    %128 = vmatprep.mubr.f32.mxu0 0.0
    %129 = vmatmul.mubr.f32.gmra.mrb[0].mxu0 %v59
    %v130 = vpop.f32.mrb[0].mxu0
    %v131 = vadd.f32 0.0, %v130
    %v132 = vpop.f32.mrb[0].mxu0
    %133 = vmatprep.mubr.f32.mxu0 0.0
    %134 = vmatmul.mubr.f32.gmra.mrb[0].mxu0 %v62
    %v135 = vpop.f32.mrb[0].mxu0
    %v136 = vadd.f32 0.0, %v135
    %v137 = vpop.f32.mrb[0].mxu0
    %138 = vdwg.mxu0
    %v139 = vadd.f32 %v51, %v131
    %v140 = vadd.f32 %v52, %v136
    %141 = vst [vmem:[#allocation2] sm:$0xff] %v139
    %142 = vst [vmem:[#allocation2 + $0x8] sm:$0xff] %v140
    // Predicated region
    $region18: #{tpu_custom_call.1} parent=1 // pred_check
      %p143 = pneg %p26
    $region19: #{tpu_custom_call.1} parent=1 // pred_check_branch
      %145 = sbr.rel (%p143) target = $region21
    $region20: #{tpu_custom_call.1} parent=1 // pred_region
      %v146 = vld [vmem:[#allocation2] sm:$0xff]
      %v147 = vld [vmem:[#allocation2 + $0x8] sm:$0xff]
      %148 = vst [vmem:[#allocation6] sm:$0xff] %v146
      %149 = vst [vmem:[#allocation6 + $0x8] sm:$0xff] %v147
    $region21: #{tpu_custom_call.1} parent=1 // pred_fallthru
      _
    // Predicated region
    $region22: #{tpu_custom_call.1} parent=1 // pred_check
      _
    $region23: #{tpu_custom_call.1} parent=1 // pred_check_branch
      %151 = sbr.rel (0) target = $region25
    $region24: #{tpu_custom_call.1} parent=1 // pred_region
      %s153 = ssub.s32 256, 256
      %154 = vsyncadd [#allocation5], %s153
      %s155 = sshll.u32 [#allocation6], 4
      %s156 = int_to_ptr.vmem [resolvable:$true] %s155
      %161 = dma.vmem_to_hbm [thread:$0]  %s156, 256, %s2, [#allocation5], 128, 128, 8
    $region25: #{tpu_custom_call.1} parent=1 // pred_fallthru
      _
    // Predicated region
    $region26: #{tpu_custom_call.1} parent=1 // pred_check
      _
    $region27: #{tpu_custom_call.1} parent=1 // pred_check_branch
      %163 = sbr.rel (0) target = $region29
    $region28: #{tpu_custom_call.1} parent=1 // pred_region
      %164 = dma.done [#allocation5], 256
    $region29: #{tpu_custom_call.1} parent=1 // pred_fallthru
      _
    %165 = vsyncpa [#allocation4], 1
    %166 = vsyncpa [#allocation5], 1

</llo_original>
